<compile_context>
chip_gen: v7x
topology: tpu7x:2x2x1
jax: 0.10.0
libtpu: 0.0.40
codegen_flags: <defaults>
</compile_context>

<pallas_src>
import jax
import jax.numpy as jnp
from jax.experimental import pallas as pl
from jax.experimental.pallas import tpu as pltpu


def _round_up(x, m):
    return (x + m - 1) // m * m


def _matmul_bias_kernel(p_ref, w_ref, b_ref, o_ref):
    # p_ref: (1, TM, K)    im2col patches (compute dtype, e.g. bf16)
    # w_ref: (K, TCO)      folded weights for this Cout tile
    # b_ref: (1, TCO)      f32 bias for this Cout tile
    # o_ref: (1, TM, TCO)  output slab; TCO == 128 -> dense lane stores
    acc = jnp.dot(p_ref[0], w_ref[...], preferred_element_type=jnp.float32)
    acc = acc + b_ref[...]
    o_ref[0] = acc.astype(o_ref.dtype)


def distributed_conv2d(x_nchw, part_weights, part_biases, *, padding=1,
                       compute_dtype=jnp.bfloat16, tile_rows=256,
                       tile_cout=128):
    """Fused equivalent of torch.cat([conv_i(x) for conv_i in parts], dim=1).

    x_nchw: (N, Cin, H, W); part_weights[i]: (Cout_i, Cin, KH, KW);
    part_biases[i]: (Cout_i,).  Stride 1.  Returns (N, sum(Cout_i), Ho, Wo).
    """
    # --- glue: concatenate the per-worker parameters (== torch.cat, dim=1) ---
    w_full = jnp.concatenate(part_weights, axis=0)   # (Cout, Cin, KH, KW)
    b_full = jnp.concatenate(part_biases, axis=0)    # (Cout,)
    Cout, Cin, KH, KW = w_full.shape
    N, _, H, W = x_nchw.shape
    out_dtype = x_nchw.dtype
    Ho = H + 2 * padding - KH + 1
    Wo = W + 2 * padding - KW + 1

    # --- lane-dense output channels: pad Cout to a multiple of 128 ----------
    TCO = tile_cout
    Cout_pad = _round_up(Cout, TCO)
    w_pad = jnp.pad(w_full, ((0, Cout_pad - Cout), (0, 0), (0, 0), (0, 0)))
    b_pad = jnp.pad(b_full, (0, Cout_pad - Cout))
    # (Cout_pad, Cin, KH, KW) -> (KH*KW*Cin, Cout_pad); index = (kh*KW+kw)*Cin+ci
    K = KH * KW * Cin
    w_mat = jnp.transpose(w_pad, (2, 3, 1, 0)).reshape(K, Cout_pad)
    w_mat = w_mat.astype(compute_dtype)
    b_mat = b_pad.reshape(1, Cout_pad).astype(jnp.float32)

    # --- im2col: fold the KHxKW taps into the matmul contraction ------------
    # TODO(synk): for production-size H*W*Cin, build the patches inside the
    # kernel from a halo'd row tile (memory_space=pl.ANY + make_async_copy)
    # instead of this XLA-side im2col, which expands input HBM traffic KH*KW x.
    # TODO(synk): fold the NCHW<->NHWC transposes into the surrounding model
    # (consume/produce channels-last) to drop two full-tensor HBM passes.
    x_nhwc = jnp.transpose(x_nchw, (0, 2, 3, 1)).astype(compute_dtype)
    x_sp = jnp.pad(x_nhwc,
                   ((0, 0), (padding, padding), (padding, padding), (0, 0)))
    cols = [x_sp[:, kh:kh + Ho, kw:kw + Wo, :]
            for kh in range(KH) for kw in range(KW)]
    patches = jnp.concatenate(cols, axis=-1).reshape(N, Ho * Wo, K)

    # --- spatial (H*W) row tiling -------------------------------------------
    M = Ho * Wo
    TM = min(tile_rows, _round_up(M, 16))
    assert TM % 16 == 0, "row tile must be a multiple of 16 (bf16 sublanes)"
    M_pad = _round_up(M, TM)
    if M_pad != M:
        patches = jnp.pad(patches, ((0, 0), (0, M_pad - M), (0, 0)))

    grid = (N, M_pad // TM, Cout_pad // TCO)

    out_flat = pl.pallas_call(
        _matmul_bias_kernel,
        out_shape=jax.ShapeDtypeStruct((N, M_pad, Cout_pad), out_dtype),
        grid_spec=pltpu.PrefetchScalarGridSpec(
            num_scalar_prefetch=0,
            grid=grid,
            in_specs=[
                pl.BlockSpec((1, TM, K), lambda n, m, c: (n, m, 0)),
                # Weight / bias blocks are grid-invariant along n/m (and only
                # depend on c); they could be single-buffered to save VMEM on
                # v7x, but at these sizes double-buffering them is harmless.
                pl.BlockSpec((K, TCO), lambda n, m, c: (0, c)),
                pl.BlockSpec((1, TCO), lambda n, m, c: (0, c)),
            ],
            out_specs=pl.BlockSpec((1, TM, TCO), lambda n, m, c: (n, m, c)),
        ),
        compiler_params=pltpu.CompilerParams(
            dimension_semantics=("parallel", "parallel", "parallel"),
            vmem_limit_bytes=32 * 1024 * 1024,
        ),
    )(patches, w_mat, b_mat)

    # Strip row / channel padding, back to NCHW to match PyTorch convention.
    out = out_flat[:, :M, :Cout].reshape(N, Ho, Wo, Cout)
    return jnp.transpose(out, (0, 3, 1, 2))


if __name__ == "__main__":
    # Small shapes: batch=2, in_channels=4, spatial=16x16,
    # output channels split unevenly across 2 "workers": [3, 5] -> 8 total.
    N, Cin, H, W = 2, 4, 16, 16
    KH = KW = 3
    part_out_channels = [3, 5]

    key = jax.random.PRNGKey(0)
    kx, *kparts = jax.random.split(key, 1 + 2 * len(part_out_channels))
    x = jax.random.normal(kx, (N, Cin, H, W), dtype=jnp.float32)

    part_weights, part_biases = [], []
    for i, co in enumerate(part_out_channels):
        kw_key, kb_key = kparts[2 * i], kparts[2 * i + 1]
        part_weights.append(
            0.1 * jax.random.normal(kw_key, (co, Cin, KH, KW), dtype=jnp.float32))
        part_biases.append(
            0.1 * jax.random.normal(kb_key, (co,), dtype=jnp.float32))

    # tile_rows=128 so the H*W grid axis is actually exercised (2 row tiles).
    out = distributed_conv2d(x, part_weights, part_biases, padding=1,
                             tile_rows=128)
    out = jax.block_until_ready(out)
    assert out.shape == (N, sum(part_out_channels), H, W)

    # Reference: one XLA conv over the concatenated params (concat of per-part
    # convs == full conv), with operands rounded to bf16 exactly as the kernel
    # sees them (accumulation stays f32), so the comparison is tight.
    w_full = jnp.concatenate(part_weights, axis=0)
    b_full = jnp.concatenate(part_biases, axis=0)
    xq = x.astype(jnp.bfloat16).astype(jnp.float32)
    wq = w_full.astype(jnp.bfloat16).astype(jnp.float32)
    ref = jax.lax.conv_general_dilated(
        xq, wq, window_strides=(1, 1), padding=((1, 1), (1, 1)),
        dimension_numbers=("NCHW", "OIHW", "NCHW"))
    ref = ref + b_full.reshape(1, -1, 1, 1)
    assert jnp.allclose(out, ref, atol=1e-4, rtol=1e-4), \
        float(jnp.max(jnp.abs(out - ref)))

    # Loose sanity check against the full-f32 reference (bf16 operand rounding).
    ref_f32 = jax.lax.conv_general_dilated(
        x, w_full, window_strides=(1, 1), padding=((1, 1), (1, 1)),
        dimension_numbers=("NCHW", "OIHW", "NCHW")) + b_full.reshape(1, -1, 1, 1)
    assert jnp.allclose(out, ref_f32, atol=1e-1, rtol=1e-1)

    print("KERNEL_OK")
</pallas_src>

<mosaic_0001>
module attributes {stable_mosaic.version = 11 : i64} {
  func.func @_matmul_bias_kernel(%arg0: i32, %arg1: i32, %arg2: i32, %arg3: memref<1x128x36xbf16, #tpu.memory_space<vmem>>, %arg4: memref<36x128xbf16, #tpu.memory_space<vmem>>, %arg5: memref<1x128xf32, #tpu.memory_space<vmem>>, %arg6: memref<1x128x128xf32, #tpu.memory_space<vmem>>) attributes {dimension_semantics = [#tpu.dimension_semantics<parallel>, #tpu.dimension_semantics<parallel>, #tpu.dimension_semantics<parallel>], iteration_bounds = array<i64: 2, 2, 1>, scalar_prefetch = 0 : i64, scratch_operands = 0 : i64, tpu.core_type = #tpu.core_type<tc>, window_params = [{transform_indices = @transform_0, window_bounds = array<i64: 1, 128, 36>}, {transform_indices = @transform_1, window_bounds = array<i64: 36, 128>}, {transform_indices = @transform_2, window_bounds = array<i64: 1, 128>}, {transform_indices = @transform_3, window_bounds = array<i64: 1, 128, 128>}]} {
    %c0 = arith.constant 0 : index
    %c0_0 = arith.constant 0 : index
    %c0_1 = arith.constant 0 : index
    %0 = vector.load %arg3[%c0, %c0_0, %c0_1] : memref<1x128x36xbf16, #tpu.memory_space<vmem>>, vector<1x128x36xbf16>
    %1 = vector.shape_cast %0 : vector<1x128x36xbf16> to vector<128x36xbf16>
    %c0_2 = arith.constant 0 : index
    %c0_3 = arith.constant 0 : index
    %2 = vector.load %arg4[%c0_2, %c0_3] : memref<36x128xbf16, #tpu.memory_space<vmem>>, vector<36x128xbf16>
    %cst = arith.constant dense<0.000000e+00> : vector<128x128xf32>
    %3 = tpu.matmul %1, %2, %cst {dimension_numbers = #tpu.dot_dimension_numbers<[1], [0], [0], [1], [0, 0, 1, 1], [], []>} : vector<128x36xbf16>, vector<36x128xbf16>, vector<128x128xf32> -> vector<128x128xf32>
    %c0_4 = arith.constant 0 : index
    %c0_5 = arith.constant 0 : index
    %4 = vector.load %arg5[%c0_4, %c0_5] : memref<1x128xf32, #tpu.memory_space<vmem>>, vector<1x128xf32>
    %5 = vector.broadcast %4 : vector<1x128xf32> to vector<128x128xf32>
    %6 = arith.addf %3, %5 : vector<128x128xf32>
    %c0_6 = arith.constant 0 : index
    %c0_7 = arith.constant 0 : index
    %c0_8 = arith.constant 0 : index
    %7 = vector.load %arg6[%c0_6, %c0_7, %c0_8] : memref<1x128x128xf32, #tpu.memory_space<vmem>>, vector<1x128x128xf32>
    %8 = vector.shape_cast %7 : vector<1x128x128xf32> to vector<128x128xf32>
    %9 = vector.shape_cast %6 : vector<128x128xf32> to vector<1x128x128xf32>
    tpu.vector_store %arg6[%c0_6, %c0_7, %c0_8], %9 {strides = array<i32>} : memref<1x128x128xf32, #tpu.memory_space<vmem>>, vector<1x128x128xf32>,
    return
  }
  func.func @transform_0(%arg0: i32, %arg1: i32, %arg2: i32) -> (i32, i32, i32) {
    %c0_i32 = arith.constant 0 : i32
    %c0_i32_0 = arith.constant 0 : i32
    return %arg0, %arg1, %c0_i32 : i32, i32, i32
  }
  func.func @transform_1(%arg0: i32, %arg1: i32, %arg2: i32) -> (i32, i32) {
    %c0_i32 = arith.constant 0 : i32
    %c0_i32_0 = arith.constant 0 : i32
    return %c0_i32, %arg2 : i32, i32
  }
  func.func @transform_2(%arg0: i32, %arg1: i32, %arg2: i32) -> (i32, i32) {
    %c0_i32 = arith.constant 0 : i32
    %c0_i32_0 = arith.constant 0 : i32
    return %c0_i32, %arg2 : i32, i32
  }
  func.func @transform_3(%arg0: i32, %arg1: i32, %arg2: i32) -> (i32, i32, i32) {
    %c0_i32 = arith.constant 0 : i32
    return %arg0, %arg1, %arg2 : i32, i32, i32
  }
}

</mosaic_0001>

<llo_original>
// kernel: tpu_custom_call.1
$region0: #{tpu_custom_call.1}
  #allocation0 [shape = 'u32[]', space=smem, size = 0x4, offset = 0x4, fixed_abs, tag = 'smem constant byte address 0x4 - core index']
  #allocation1 [shape = 'u32[144,128]{1,0:T(1,128)}', space=vmem, size = 0x12000, scoped, tag = 'internal scratch']
  %s0 = inlined_call_operand.vmem [shape: bf16[2,256,36], index: 0, kind: input, shape index: {}]
  %s1 = inlined_call_operand.vmem [shape: bf16[36,128], index: 1, kind: input, shape index: {}]
  %s2 = inlined_call_operand.vmem [shape: f32[1,128], index: 2, kind: input, shape index: {}]
  %s3 = inlined_call_operand.hbm [shape: f32[2,256,128], index: 3, kind: output, shape index: {}]
  %s4 = sld [smem:[#allocation0]]
  $region45: #{tpu_custom_call.1} parent=0
    _
  %s6 = ssub.s32 1, %s4
  %s7 = scalar_select 0, %s6, %s4
  $region1: #{tpu_custom_call.1} parent=0
    #allocation2 [shape = 'u8[131072]{0}', space=vmem, size = 0x20000, scoped, tag = 'output window, operand 0']
    #allocation3 [shape = 's32[2]{0}', space=sflag, size = 0x8, scoped, tag = 'scoped memory for tpu_custom_call.1']
    %8 = vsyncpa [#allocation3], 0
    %s9 = scalar_lea.sflag [#allocation3], 1
    %10 = vsyncpa %s9, 0
    loop: start=0, step=1, limit=6
    $region2: #{tpu_custom_call.1} parent=1 // loop_pre_header
      _
    $region3: #{tpu_custom_call.1} parent=1 // loop_header
      %s12 = sphi 0, %s16
      %p13 = scmp.ge.s32.totalorder %s12, 6
      %s19 = sphi 0, %s38
      %s20 = sphi 0, %s34
      %s21 = sphi 0, %s30
      %s22 = sphi 0, %s19
      %s23 = sphi 0, %s20
      %s24 = sphi 0, %s21
      %s25 = sphi 0, %s22
      %s26 = sphi 0, %s23
      %s27 = sphi 0, %s24
      %s43 = sphi 0, %s45
      %s46 = sphi 0, %s43
      %s47 = sphi 0, %s46
      %s63 = sphi 0, %s47
      %s69 = sphi 0, %s71
      %s72 = sphi 0, %s69
      %s73 = sphi 0, %s72
      %s89 = sphi 0, %s73
      %s95 = sphi 0, %s97
      %s98 = sphi 0, %s95
      %s99 = sphi 0, %s98
      %s115 = sphi 0, %s99
      %s125 = sphi 0, %s127
      %s128 = sphi 0, %s125
      %s129 = sphi 0, %s128
      %s145 = sphi 0, %s129
    $region4: #{tpu_custom_call.1} parent=1 // loop_header_branch
      %15 = sbr.rel (%p13) target = $region8
    $region5: #{tpu_custom_call.1} parent=1 // loop_body
      %s17 = ssub.s32 %s12, 1
      %s18 = ssub.s32 %s12, 2
      %s28 = sadd.s32 1, %s21
      %p29 = scmp.ge.s32.totalorder %s28, 1
      %s30 = scalar_select %p29, 0, %s28
      %s31 = sadd.s32 1, %s20
      %s32 = scalar_select %p29, %s31, %s20
      %p33 = scmp.ge.s32.totalorder %s32, 2
      %s34 = scalar_select %p33, 0, %s32
      %s35 = sadd.s32 1, %s19
      %s36 = scalar_select %p33, %s35, %s19
      %p37 = scmp.ge.s32.totalorder %s36, 2
      %s38 = scalar_select %p37, 0, %s36
      %s39 = ssub.s32 %s19, %s38
      %s40 = ssub.s32 %s20, %s34
      %s41 = sor.u32 %s39, %s40
      %p42 = scmp.eq.s32.totalorder %s41, 0
      %s44 = sadd.s32 %s43, 1
      %s45 = scalar_select %p42, %s43, %s44
      %p48 = pneg %p42
      %p49 = scmp.eq.s32.totalorder %s12, 3
      %p50 = por %p48, %p49
      %p51 = scmp.ne.s32.totalorder %s43, %s46
      %p52 = scmp.eq.s32.totalorder %s12, 0
      %p53 = por %p51, %p52
      %p54 = scmp.ne.s32.totalorder %s43, %s46
      %p55 = scmp.eq.s32.totalorder %s17, 3
      %p56 = por %p54, %p55
      %p57 = scmp.ne.s32.totalorder %s46, %s47
      %p58 = scmp.eq.s32.totalorder %s17, 0
      %p59 = por %p57, %p58
      %p60 = scmp.ne.s32.totalorder %s46, %s47
      %p61 = scmp.eq.s32.totalorder %s18, 3
      %p62 = por %p60, %p61
      %p64 = scmp.ne.s32.totalorder %s47, %s63
      %p65 = scmp.eq.s32.totalorder %s18, 0
      %p66 = por %p64, %p65
      %s67 = ssub.s32 %s21, %s30
      %p68 = scmp.eq.s32.totalorder %s67, 0
      %s70 = sadd.s32 %s69, 1
      %s71 = scalar_select %p68, %s69, %s70
      %p74 = pneg %p68
      %p75 = scmp.eq.s32.totalorder %s12, 3
      %p76 = por %p74, %p75
      %p77 = scmp.ne.s32.totalorder %s69, %s72
      %p78 = scmp.eq.s32.totalorder %s12, 0
      %p79 = por %p77, %p78
      %p80 = scmp.ne.s32.totalorder %s69, %s72
      %p81 = scmp.eq.s32.totalorder %s17, 3
      %p82 = por %p80, %p81
      %p83 = scmp.ne.s32.totalorder %s72, %s73
      %p84 = scmp.eq.s32.totalorder %s17, 0
      %p85 = por %p83, %p84
      %p86 = scmp.ne.s32.totalorder %s72, %s73
      %p87 = scmp.eq.s32.totalorder %s18, 3
      %p88 = por %p86, %p87
      %p90 = scmp.ne.s32.totalorder %s73, %s89
      %p91 = scmp.eq.s32.totalorder %s18, 0
      %p92 = por %p90, %p91
      %s93 = ssub.s32 %s21, %s30
      %p94 = scmp.eq.s32.totalorder %s93, 0
      %s96 = sadd.s32 %s95, 1
      %s97 = scalar_select %p94, %s95, %s96
      %p100 = pneg %p94
      %p101 = scmp.eq.s32.totalorder %s12, 3
      %p102 = por %p100, %p101
      %p103 = scmp.ne.s32.totalorder %s95, %s98
      %p104 = scmp.eq.s32.totalorder %s12, 0
      %p105 = por %p103, %p104
      %p106 = scmp.ne.s32.totalorder %s95, %s98
      %p107 = scmp.eq.s32.totalorder %s17, 3
      %p108 = por %p106, %p107
      %p109 = scmp.ne.s32.totalorder %s98, %s99
      %p110 = scmp.eq.s32.totalorder %s17, 0
      %p111 = por %p109, %p110
      %p112 = scmp.ne.s32.totalorder %s98, %s99
      %p113 = scmp.eq.s32.totalorder %s18, 3
      %p114 = por %p112, %p113
      %p116 = scmp.ne.s32.totalorder %s99, %s115
      %p117 = scmp.eq.s32.totalorder %s18, 0
      %p118 = por %p116, %p117
      %s119 = ssub.s32 %s19, %s38
      %s120 = ssub.s32 %s20, %s34
      %s121 = sor.u32 %s119, %s120
      %s122 = ssub.s32 %s21, %s30
      %s123 = sor.u32 %s121, %s122
      %p124 = scmp.eq.s32.totalorder %s123, 0
      %s126 = sadd.s32 %s125, 1
      %s127 = scalar_select %p124, %s125, %s126
      %p130 = pneg %p124
      %p131 = scmp.eq.s32.totalorder %s12, 3
      %p132 = por %p130, %p131
      %p133 = scmp.ne.s32.totalorder %s125, %s128
      %p134 = scmp.eq.s32.totalorder %s12, 0
      %p135 = por %p133, %p134
      %p136 = scmp.ne.s32.totalorder %s125, %s128
      %p137 = scmp.eq.s32.totalorder %s17, 3
      %p138 = por %p136, %p137
      %p139 = scmp.ne.s32.totalorder %s128, %s129
      %p140 = scmp.eq.s32.totalorder %s17, 0
      %p141 = por %p139, %p140
      %p142 = scmp.ne.s32.totalorder %s128, %s129
      %p143 = scmp.eq.s32.totalorder %s18, 3
      %p144 = por %p142, %p143
      %p146 = scmp.ne.s32.totalorder %s129, %s145
      %p147 = scmp.eq.s32.totalorder %s18, 0
      %p148 = por %p146, %p147
      %p149 = scmp.le.s32.totalorder 1, %s12
      %p150 = scmp.lt.s32.totalorder %s12, 5
      %p151 = pnand %p149, %p150
      %p152 = pneg %p151
      // Predicated region
      $region9: #{tpu_custom_call.1} parent=5 // pred_check
        _
      $region10: #{tpu_custom_call.1} parent=5 // pred_check_branch
        %154 = sbr.rel (%p151) target = $region12
      $region11: #{tpu_custom_call.1} parent=5 // pred_region
        %s155 = ssub.s32 %s12, 1
        // Predicated region
        $region13: #{tpu_custom_call.1} parent=11 // pred_check
          %p156 = pneg %p85
        $region14: #{tpu_custom_call.1} parent=11 // pred_check_branch
          %158 = sbr.rel (%p156) target = $region16
        $region15: #{tpu_custom_call.1} parent=11 // pred_region
          %p159 = scmp.lt.s32.totalorder %s24, 0
          %s160 = scalar_select %p159, %s24, 0
          %s161 = smul.addr %s160, 4
          %s162 = scalar_lea.vmem %s1, %s161
        $region16: #{tpu_custom_call.1} parent=11 // pred_fallthru
          _
        // Predicated region
        $region17: #{tpu_custom_call.1} parent=11 // pred_check
          %p163 = pneg %p111
        $region18: #{tpu_custom_call.1} parent=11 // pred_check_branch
          %165 = sbr.rel (%p163) target = $region20
        $region19: #{tpu_custom_call.1} parent=11 // pred_region
          %p166 = scmp.lt.s32.totalorder %s24, 0
          %s167 = scalar_select %p166, %s24, 0
          %s168 = scalar_lea.vmem %s2, %s167
        $region20: #{tpu_custom_call.1} parent=11 // pred_fallthru
          _
      $region12: #{tpu_custom_call.1} parent=5 // pred_fallthru
        _
      %p169 = scmp.lt.s32.totalorder %s12, 4
      // Predicated region
      $region21: #{tpu_custom_call.1} parent=5 // pred_check
        %p170 = pneg %p169
      $region22: #{tpu_custom_call.1} parent=5 // pred_check_branch
        %172 = sbr.rel (%p170) target = $region24
      $region23: #{tpu_custom_call.1} parent=5 // pred_region
        // Predicated region
        $region25: #{tpu_custom_call.1} parent=23 // pred_check
          %p173 = pneg %p53
        $region26: #{tpu_custom_call.1} parent=23 // pred_check_branch
          %175 = sbr.rel (%p173) target = $region28
        $region27: #{tpu_custom_call.1} parent=23 // pred_region
          %s176 = smul.u32 16, %s20
          %p177 = scmp.lt.s32.totalorder %s19, 1
          %s178 = scalar_select %p177, %s19, 1
          %p179 = scmp.lt.s32.totalorder %s176, 31
          %s180 = scalar_select %p179, %s176, 31
          %s181 = smul.addr %s178, 32
          %s182 = sadd.s32 %s180, %s181
          %s183 = smul.addr %s182, 4
          %s184 = scalar_lea.vmem %s0, %s183
          %s185 = smul.u32 16, %s20
        $region28: #{tpu_custom_call.1} parent=23 // pred_fallthru
          _
      $region24: #{tpu_custom_call.1} parent=5 // pred_fallthru
        _
      %p186 = scmp.le.s32.totalorder 1, %s12
      %p187 = scmp.lt.s32.totalorder %s12, 5
      %p188 = pnand %p186, %p187
      %p189 = pneg %p188
      // Predicated region
      $region29: #{tpu_custom_call.1} parent=5 // pred_check
        _
      $region30: #{tpu_custom_call.1} parent=5 // pred_check_branch
        %191 = sbr.rel (%p188) target = $region32
      $region31: #{tpu_custom_call.1} parent=5 // pred_region
        %s192 = ssub.s32 %s12, 1
        %s193 = smul.u32 16, %s23
        %p194 = scmp.lt.s32.totalorder %s22, 1
        %s195 = scalar_select %p194, %s22, 1
        %p196 = scmp.lt.s32.totalorder %s193, 31
        %s197 = scalar_select %p196, %s193, 31
        %s198 = smul.addr %s195, 32
        %s199 = sadd.s32 %s197, %s198
        %s200 = smul.addr %s199, 4
        %s201 = scalar_lea.vmem %s0, %s200
        %p202 = pneg %p59
        %p203 = pneg %p56
        %p204 = scmp.lt.s32.totalorder %s24, 0
        %s205 = scalar_select %p204, %s24, 0
        %s206 = smul.addr %s205, 4
        %s207 = scalar_lea.vmem %s1, %s206
        %p208 = pneg %p85
        %p209 = pneg %p82
        %p210 = scmp.lt.s32.totalorder %s24, 0
        %s211 = scalar_select %p210, %s24, 0
        %s212 = scalar_lea.vmem %s2, %s211
        %p213 = pneg %p111
        %p214 = pneg %p108
        %p215 = pneg %p141
        %p216 = pneg %p138
        %s217 = sand.u32 %s128, 1
        %s218 = scalar_lea.sflag [#allocation3], %s217
        %s219 = sand.u32 %s128, 1
        %s220 = smul.addr %s219, 128
        %s221 = scalar_lea.vmem [#allocation2], %s220
        %s222 = smul.u32 16, %s23
        %p223 = scmp.lt.s32.totalorder %s22, 1
        %s224 = scalar_select %p223, %s22, 1
        %p225 = scmp.lt.s32.totalorder %s222, 31
        %s226 = scalar_select %p225, %s222, 31
        %s227 = smul.addr %s224, 32
        %s228 = sadd.s32 %s226, %s227
        %s229 = smul.addr %s228, 4
        %s230 = scalar_lea.vmem %s0, %s229
        %s231 = smul.u32 16, %s23
        %p232 = scmp.lt.s32.totalorder %s24, 0
        %s233 = scalar_select %p232, %s24, 0
        %s234 = smul.addr %s233, 4
        %s235 = scalar_lea.vmem %s1, %s234
        %p236 = scmp.lt.s32.totalorder %s24, 0
        %s237 = scalar_select %p236, %s24, 0
        %s238 = scalar_lea.vmem %s2, %s237
        %s239 = smul.u32 16, %s23
        %v241 = vld [vmem:[%s230] sm:$0xf]
        %v242 = vld [vmem:[%s230 + $0x4] sm:$0xf]
        %v243 = vld [vmem:[%s230 + $0x8] sm:$0xf]
        %v244 = vld [vmem:[%s230 + $0xc] sm:$0xf]
        %v245 = vld [vmem:[%s230 + $0x10] sm:$0xf]
        %v246 = vld [vmem:[%s230 + $0x14] sm:$0xf]
        %v247 = vld [vmem:[%s230 + $0x18] sm:$0xf]
        %v248 = vld [vmem:[%s230 + $0x1c] sm:$0xf]
        %v249 = vld [vmem:[%s230 + $0x20] sm:$0xf]
        %v250 = vld [vmem:[%s230 + $0x24] sm:$0xf]
        %v251 = vld [vmem:[%s230 + $0x28] sm:$0xf]
        %v252 = vld [vmem:[%s230 + $0x2c] sm:$0xf]
        %v253 = vld [vmem:[%s230 + $0x30] sm:$0xf]
        %v254 = vld [vmem:[%s230 + $0x34] sm:$0xf]
        %v255 = vld [vmem:[%s230 + $0x38] sm:$0xf]
        %v256 = vld [vmem:[%s230 + $0x3c] sm:$0xf]
        %v257 = vld [vmem:[%s235] sm:$0xf]
        %v258 = vld [vmem:[%s235 + $0x4] sm:$0xf]
        %v259 = vld [vmem:[%s235 + $0x8] sm:$0xf]
        %v260 = vld [vmem:[%s235 + $0xc] sm:$0xf]
        %v261 = vld [vmem:[%s235 + $0x10] sm:$0x3]
        %v262 = vld [vmem:[%s238] sm:$0x1]
        %v264 = vlaneseq
        %v265 = vshrl.u32 %v264, 7
        %v266 = vsub.s32 0, %v265
        %v267 = vrot.slane %v262, %v266
        %v285 = vunpack.c.l.b16 %v241
        %v286 = vunpack.c.l.b16 %v242
        %v287 = vunpack.c.l.b16 %v243
        %v288 = vunpack.c.l.b16 %v244
        %v289 = vunpack.c.l.b16 %v245
        %v290 = vunpack.c.l.b16 %v246
        %v291 = vunpack.c.l.b16 %v247
        %v292 = vunpack.c.l.b16 %v248
        %v293 = vunpack.c.l.b16 %v249
        %v294 = vunpack.c.l.b16 %v250
        %v295 = vunpack.c.l.b16 %v251
        %v296 = vunpack.c.l.b16 %v252
        %v297 = vunpack.c.l.b16 %v253
        %v298 = vunpack.c.l.b16 %v254
        %v299 = vunpack.c.l.b16 %v255
        %v300 = vunpack.c.l.b16 %v256
        %v301 = vpack.c.b16 %v286, %v285
        %v302 = vpack.c.b16 %v288, %v287
        %v303 = vpack.c.b16 %v290, %v289
        %v304 = vpack.c.b16 %v292, %v291
        %v305 = vpack.c.b16 %v294, %v293
        %v306 = vpack.c.b16 %v296, %v295
        %v307 = vpack.c.b16 %v298, %v297
        %v308 = vpack.c.b16 %v300, %v299
        %v314 = vunpack.c.l.b16 %v257
        %v315 = vunpack.c.l.b16 %v258
        %v316 = vunpack.c.l.b16 %v259
        %v317 = vunpack.c.l.b16 %v260
        %v318 = vunpack.c.l.b16 %v261
        %v319 = vpack.c.b16 %v315, %v314
        %v320 = vpack.c.b16 %v317, %v316
        %v321 = vpack.c.b16 %v318, %v318
        %vm324 = vcmask 293888
        %v326 = vsel %vm324, %v301, 0
        %v329 = vsel %vm324, %v302, 0
        %v332 = vsel %vm324, %v303, 0
        %v335 = vsel %vm324, %v304, 0
        %v338 = vsel %vm324, %v305, 0
        %v341 = vsel %vm324, %v306, 0
        %v344 = vsel %vm324, %v307, 0
        %v347 = vsel %vm324, %v308, 0
        %vm349 = vcmask 1041408
        %v351 = vsel %vm349, %v321, 0
        %353 = vmatprep.subr.bf16.mxu0 0
        %354 = vmatpush1.bf16.msra.mxu0 %v319
        %355 = vmatprep.subr.bf16.mxu0 0
        %356 = vmatpush1.bf16.msra.mxu0 %v320
        %357 = vmatprep.subr.bf16.mxu0 0
        %358 = vmatpush1.bf16.msra.mxu0 %v351
        %359 = vmatprep.subr.bf16.mxu0 0
        %360 = vmatpush1.bf16.msra.mxu0 0
        %361 = vmatprep.subr.bf16.mxu0 0
        %362 = vmatpush1.bf16.msra.mxu0 0
        %363 = vmatprep.subr.bf16.mxu0 0
        %364 = vmatpush1.bf16.msra.mxu0 0
        %365 = vmatprep.subr.bf16.mxu0 0
        %366 = vmatpush1.bf16.msra.mxu0 0
        %367 = vmatprep.subr.bf16.mxu0 0
        %368 = vmatpush1.bf16.msra.mxu0 0
        %369 = vmatprep.subr.bf16.mxu0 0
        %370 = vmatpush1.bf16.msra.mxu0 0
        %371 = vmatprep.subr.bf16.mxu0 0
        %372 = vmatpush1.bf16.msra.mxu0 0
        %373 = vmatprep.subr.bf16.mxu0 0
        %374 = vmatpush1.bf16.msra.mxu0 0
        %375 = vmatprep.subr.bf16.mxu0 0
        %376 = vmatpush1.bf16.msra.mxu0 0
        %377 = vmatprep.subr.bf16.mxu0 0
        %378 = vmatpush1.bf16.msra.mxu0 0
        %379 = vmatprep.subr.bf16.mxu0 0
        %380 = vmatpush1.bf16.msra.mxu0 0
        %381 = vmatprep.subr.bf16.mxu0 0
        %382 = vmatpush1.bf16.msra.mxu0 0
        %383 = vmatprep.subr.bf16.mxu0 0
        %384 = vmatpush1.bf16.msra.mxu0 0
        %385 = vmatprep.mubr.bf16.mxu0 0
        %386 = vmatmul.mubr.bf16.gmra.mrb[0].mxu0 %v326
        %v387 = vpop.f32.mrb[0].mxu0
        %v388 = vadd.f32 %v267, %v387
        %v389 = vpop.f32.mrb[0].mxu0
        %v390 = vpop.f32.mrb[0].mxu0
        %v391 = vadd.f32 %v267, %v390
        %v392 = vpop.f32.mrb[0].mxu0
        %393 = vmatprep.mubr.bf16.mxu0 0
        %394 = vmatmul.mubr.bf16.gmra.mrb[0].mxu0 %v329
        %v395 = vpop.f32.mrb[0].mxu0
        %v396 = vadd.f32 %v267, %v395
        %v397 = vpop.f32.mrb[0].mxu0
        %v398 = vpop.f32.mrb[0].mxu0
        %v399 = vadd.f32 %v267, %v398
        %v400 = vpop.f32.mrb[0].mxu0
        %401 = vmatprep.mubr.bf16.mxu0 0
        %402 = vmatmul.mubr.bf16.gmra.mrb[0].mxu0 %v332
        %v403 = vpop.f32.mrb[0].mxu0
        %v404 = vadd.f32 %v267, %v403
        %v405 = vpop.f32.mrb[0].mxu0
        %v406 = vpop.f32.mrb[0].mxu0
        %v407 = vadd.f32 %v267, %v406
        %v408 = vpop.f32.mrb[0].mxu0
        %409 = vmatprep.mubr.bf16.mxu0 0
        %410 = vmatmul.mubr.bf16.gmra.mrb[0].mxu0 %v335
        %v411 = vpop.f32.mrb[0].mxu0
        %v412 = vadd.f32 %v267, %v411
        %v413 = vpop.f32.mrb[0].mxu0
        %v414 = vpop.f32.mrb[0].mxu0
        %v415 = vadd.f32 %v267, %v414
        %v416 = vpop.f32.mrb[0].mxu0
        %417 = vmatprep.mubr.bf16.mxu0 0
        %418 = vmatmul.mubr.bf16.gmra.mrb[0].mxu0 %v338
        %v419 = vpop.f32.mrb[0].mxu0
        %v420 = vadd.f32 %v267, %v419
        %v421 = vpop.f32.mrb[0].mxu0
        %v422 = vpop.f32.mrb[0].mxu0
        %v423 = vadd.f32 %v267, %v422
        %v424 = vpop.f32.mrb[0].mxu0
        %425 = vmatprep.mubr.bf16.mxu0 0
        %426 = vmatmul.mubr.bf16.gmra.mrb[0].mxu0 %v341
        %v427 = vpop.f32.mrb[0].mxu0
        %v428 = vadd.f32 %v267, %v427
        %v429 = vpop.f32.mrb[0].mxu0
        %v430 = vpop.f32.mrb[0].mxu0
        %v431 = vadd.f32 %v267, %v430
        %v432 = vpop.f32.mrb[0].mxu0
        %433 = vmatprep.mubr.bf16.mxu0 0
        %434 = vmatmul.mubr.bf16.gmra.mrb[0].mxu0 %v344
        %v435 = vpop.f32.mrb[0].mxu0
        %v436 = vadd.f32 %v267, %v435
        %v437 = vpop.f32.mrb[0].mxu0
        %v438 = vpop.f32.mrb[0].mxu0
        %v439 = vadd.f32 %v267, %v438
        %v440 = vpop.f32.mrb[0].mxu0
        %441 = vmatprep.mubr.bf16.mxu0 0
        %442 = vmatmul.mubr.bf16.gmra.mrb[0].mxu0 %v347
        %v443 = vpop.f32.mrb[0].mxu0
        %v444 = vadd.f32 %v267, %v443
        %v445 = vpop.f32.mrb[0].mxu0
        %v446 = vpop.f32.mrb[0].mxu0
        %v447 = vadd.f32 %v267, %v446
        %v448 = vpop.f32.mrb[0].mxu0
        %449 = vdwg.mxu0
        %450 = vst [vmem:[%s221] sm:$0xff] %v388
        %451 = vst [vmem:[%s221 + $0x8] sm:$0xff] %v391
        %452 = vst [vmem:[%s221 + $0x10] sm:$0xff] %v396
        %453 = vst [vmem:[%s221 + $0x18] sm:$0xff] %v399
        %454 = vst [vmem:[%s221 + $0x20] sm:$0xff] %v404
        %455 = vst [vmem:[%s221 + $0x28] sm:$0xff] %v407
        %456 = vst [vmem:[%s221 + $0x30] sm:$0xff] %v412
        %457 = vst [vmem:[%s221 + $0x38] sm:$0xff] %v415
        %458 = vst [vmem:[%s221 + $0x40] sm:$0xff] %v420
        %459 = vst [vmem:[%s221 + $0x48] sm:$0xff] %v423
        %460 = vst [vmem:[%s221 + $0x50] sm:$0xff] %v428
        %461 = vst [vmem:[%s221 + $0x58] sm:$0xff] %v431
        %462 = vst [vmem:[%s221 + $0x60] sm:$0xff] %v436
        %463 = vst [vmem:[%s221 + $0x68] sm:$0xff] %v439
        %464 = vst [vmem:[%s221 + $0x70] sm:$0xff] %v444
        %465 = vst [vmem:[%s221 + $0x78] sm:$0xff] %v447
        %s466 = sand.u32 %s128, 1
        %s467 = scalar_lea.sflag [#allocation3], %s466
        %s468 = sand.u32 %s128, 1
        %s469 = smul.addr %s468, 128
        %s470 = scalar_lea.vmem [#allocation2], %s469
        // Predicated region
        $region33: #{tpu_custom_call.1} parent=31 // pred_check
          %p471 = pneg %p138
        $region34: #{tpu_custom_call.1} parent=31 // pred_check_branch
          %473 = sbr.rel (%p471) target = $region36
        $region35: #{tpu_custom_call.1} parent=31 // pred_region
          %s474 = smul.u32 16, %s23
          %s476 = ssub.s32 2048, 2048
          %477 = vsyncadd %s467, %s476
          %s478 = sadd.s32 %s24, %s474
          %s479 = smul.addr %s22, 32
          %s480 = sadd.s32 %s478, %s479
          %s481 = smul.addr %s480, 128
          %s482 = scalar_lea.hbm %s3, %s481
          %s483 = sshll.u32 %s470, 4
          %s484 = int_to_ptr.vmem [resolvable:$true] %s483
          %489 = dma.vmem_to_hbm [thread:$0]  %s484, 2048, %s482, %s467, 128, 128, 8
        $region36: #{tpu_custom_call.1} parent=31 // pred_fallthru
          _
      $region32: #{tpu_custom_call.1} parent=5 // pred_fallthru
        _
      %p490 = scmp.le.s32.totalorder 2, %s12
      // Predicated region
      $region37: #{tpu_custom_call.1} parent=5 // pred_check
        %p491 = pneg %p490
      $region38: #{tpu_custom_call.1} parent=5 // pred_check_branch
        %493 = sbr.rel (%p491) target = $region40
      $region39: #{tpu_custom_call.1} parent=5 // pred_region
        %s494 = ssub.s32 %s12, 2
        // Predicated region
        $region41: #{tpu_custom_call.1} parent=39 // pred_check
          %p495 = pneg %p144
        $region42: #{tpu_custom_call.1} parent=39 // pred_check_branch
          %497 = sbr.rel (%p495) target = $region44
        $region43: #{tpu_custom_call.1} parent=39 // pred_region
          %s498 = sand.u32 %s129, 1
          %s499 = scalar_lea.sflag [#allocation3], %s498
          %s500 = sand.u32 %s129, 1
          %s501 = smul.addr %s500, 128
          %s502 = scalar_lea.vmem [#allocation2], %s501
          %503 = dma.done %s499, 2048
        $region44: #{tpu_custom_call.1} parent=39 // pred_fallthru
          _
      $region40: #{tpu_custom_call.1} parent=5 // pred_fallthru
        _
    $region6: #{tpu_custom_call.1} parent=1 // loop_footer
      %s16 = sadd.s32 1, %s12
    $region7: #{tpu_custom_call.1} parent=1 // loop_footer_branch
      %11 = sbr.rel target = $region3
    $region8: #{tpu_custom_call.1} parent=1 // loop_exit
      _
    %504 = vsyncpa [#allocation3], 1
    %s505 = scalar_lea.sflag [#allocation3], 1
    %506 = vsyncpa %s505, 1

</llo_original>
